<compile_context>
chip_gen: v6e
topology: v6e:2x2x1
jax: 0.10.0
libtpu: 0.0.40
codegen_flags: <defaults>
</compile_context>

<pallas_src>
import functools

import jax
import jax.numpy as jnp
from jax.experimental import pallas as pl
from jax.experimental.pallas import tpu as pltpu


def _round_up(x, m):
    return ((x + m - 1) // m) * m


def encoder_kernel(x_ref, w0_ref, b0_ref, w1_ref, b1_ref, w2_ref, b2_ref,
                   o_ref):
    """Fused 3-layer MLP + tanh head.

    x_ref : (TB, a_size)     -- batch-major feat tile (PyTorch layout)
    wK    : (out_K, in_K)    -- PyTorch-native nn.Linear layout
    bK    : (out_K, 1)       -- broadcasts over the TB lanes
    o_ref : (TB, beta_size)  -- batch-major output tile

    Internally the compute runs with batch on the 128-lane axis:
    x = feat_tile.T of shape (a_size, TB); the small transposes at the
    boundaries go to the XLU, which is otherwise idle.
    """
    x = x_ref[...].T  # (a_size, TB): lane-dense over batch

    # hidden layer 0: tanh(W0 @ x + b0)
    h = jnp.tanh(
        jnp.dot(w0_ref[...], x, preferred_element_type=jnp.float32)
        + b0_ref[...])

    # hidden layer 1: tanh(W1 @ h + b1)
    h = jnp.tanh(
        jnp.dot(w1_ref[...], h, preferred_element_type=jnp.float32)
        + b1_ref[...])

    # output layer of EncoderFCNet (no activation) ...
    beta = (jnp.dot(w2_ref[...], h, preferred_element_type=jnp.float32)
            + b2_ref[...])

    # ... then Encoder.forward applies a final tanh; transpose back to
    # batch-major (TB, beta_size) for the store.
    o_ref[...] = jnp.tanh(beta).T.astype(o_ref.dtype)


def encoder_reference(feat, params):
    """Pure-JAX f32 reference (matches the PyTorch forward)."""
    (w0, b0), (w1, b1), (w2, b2) = params
    h = jnp.tanh(feat @ w0.T + b0.T)
    h = jnp.tanh(h @ w1.T + b1.T)
    beta = h @ w2.T + b2.T
    return jnp.tanh(beta)


def encoder_forward(feat, params, *, batch_tile=4096, min_pallas_batch=256,
                    use_pallas=None):
    """feat: (B, a_size) float32.  params: [(W, b)] with W:(out,in), b:(out,1)."""
    B, a_size = feat.shape
    (w0, b0), (w1, b1), (w2, b2) = params
    h0, h1, beta_size = w0.shape[0], w1.shape[0], w2.shape[0]
    assert w0.shape[1] == a_size and w1.shape[1] == h0 and w2.shape[1] == h1

    if use_pallas is None:
        use_pallas = B >= min_pallas_batch
    if not use_pallas:
        # Small-batch fast path: fixed kernel-launch cost dwarfs the few
        # kFLOP of real work; let XLA's fused dense path handle it.
        return encoder_reference(feat, params)

    # Batch maps to lanes inside the kernel -> tile must be a multiple of 128.
    tile = _round_up(min(batch_tile, _round_up(B, 128)), 128)
    # Keep >=2 grid steps when the batch allows it so the "parallel" axis can
    # be sharded across both TensorCores on v7x (harmless elsewhere).
    if pl.cdiv(B, tile) < 2 and B >= 256:
        tile = _round_up(-(-B // 2), 128)
    grid = (pl.cdiv(B, tile),)

    def const_spec(shape):
        # parameters: same full block every grid step (stays VMEM-resident)
        return pl.BlockSpec(shape, lambda i: (0, 0))

    flops = 2 * B * (a_size * h0 + h0 * h1 + h1 * beta_size)
    transcendentals = B * (h0 + h1 + beta_size)
    param_bytes = sum(int(a.size) * 4 for pair in params for a in pair)
    bytes_accessed = B * (a_size + beta_size) * 4 + param_bytes

    out = pl.pallas_call(
        encoder_kernel,
        out_shape=jax.ShapeDtypeStruct((B, beta_size), jnp.float32),
        grid_spec=pl.GridSpec(
            grid=grid,
            in_specs=[
                pl.BlockSpec((tile, a_size), lambda i: (i, 0)),  # feat tile
                const_spec(w0.shape), const_spec(b0.shape),
                const_spec(w1.shape), const_spec(b1.shape),
                const_spec(w2.shape), const_spec(b2.shape),
            ],
            out_specs=pl.BlockSpec((tile, beta_size), lambda i: (i, 0)),
        ),
        compiler_params=pltpu.CompilerParams(
            dimension_semantics=("parallel",),  # megacore-shardable on v7x
        ),
        cost_estimate=pl.CostEstimate(
            flops=flops,
            transcendentals=transcendentals,
            bytes_accessed=bytes_accessed,
        ),
    )(feat, w0, b0, w1, b1, w2, b2)

    return out


def init_params(layers_list, key):
    """Deterministic synthetic params in PyTorch nn.Linear layout.

    W: (out_features, in_features),  b: (out_features, 1).
    """
    params = []
    for fan_in, fan_out in zip(layers_list[:-1], layers_list[1:]):
        key, kw, kb = jax.random.split(key, 3)
        bound = 1.0 / jnp.sqrt(fan_in)  # PyTorch nn.Linear default init range
        w = jax.random.uniform(kw, (fan_out, fan_in), jnp.float32, -bound, bound)
        b = jax.random.uniform(kb, (fan_out, 1), jnp.float32, -bound, bound)
        params.append((w, b))
    return params


if __name__ == "__main__":
    key = jax.random.PRNGKey(0)
    key, kx1, kx2 = jax.random.split(key, 3)

    # layers_list = [a_size, hidden, hidden, beta_size]
    layers_list = [16, 32, 32, 8]
    params = init_params(layers_list, key)

    # 1) Batch large enough for the Pallas path, not divisible by 128
    #    (exercises the ragged last tile + >=2 parallel grid steps).
    batch = 300
    feat = jax.random.normal(kx1, (batch, layers_list[0]), dtype=jnp.float32)
    out = jax.block_until_ready(encoder_forward(feat, params))
    ref = encoder_reference(feat, params)
    assert out.shape == (batch, layers_list[-1])
    assert jnp.allclose(out, ref, atol=1e-4, rtol=0.0), "mismatch vs reference"

    # 2) Tiny batch forced through the Pallas kernel (128-row tile, 8 valid rows).
    batch_s = 8
    feat_s = jax.random.normal(kx2, (batch_s, layers_list[0]), dtype=jnp.float32)
    out_s = jax.block_until_ready(
        encoder_forward(feat_s, params, use_pallas=True))
    ref_s = encoder_reference(feat_s, params)
    assert out_s.shape == (batch_s, layers_list[-1])
    assert jnp.allclose(out_s, ref_s, atol=1e-4, rtol=0.0), "mismatch (small B)"

    # 3) Tiny batch via the auto fast path (no kernel launch).
    out_fp = jax.block_until_ready(encoder_forward(feat_s, params))
    assert jnp.allclose(out_fp, ref_s, atol=1e-5, rtol=0.0), "fast path mismatch"

    print("KERNEL_OK")
</pallas_src>

<mosaic_0001>
module attributes {stable_mosaic.version = 11 : i64} {
  func.func @encoder_kernel(%arg0: i32, %arg1: memref<256x16xf32, #tpu.memory_space<vmem>>, %arg2: memref<32x16xf32, #tpu.memory_space<vmem>>, %arg3: memref<32x1xf32, #tpu.memory_space<vmem>>, %arg4: memref<32x32xf32, #tpu.memory_space<vmem>>, %arg5: memref<32x1xf32, #tpu.memory_space<vmem>>, %arg6: memref<8x32xf32, #tpu.memory_space<vmem>>, %arg7: memref<8x1xf32, #tpu.memory_space<vmem>>, %arg8: memref<256x8xf32, #tpu.memory_space<vmem>>) attributes {dimension_semantics = [#tpu.dimension_semantics<parallel>], iteration_bounds = array<i64: 2>, scalar_prefetch = 0 : i64, scratch_operands = 0 : i64, tpu.core_type = #tpu.core_type<tc>, window_params = [{transform_indices = @transform_0, window_bounds = array<i64: 256, 16>}, {pipeline_mode = #tpu.pipeline_mode<synchronous>, transform_indices = @transform_1, window_bounds = array<i64: 32, 16>}, {pipeline_mode = #tpu.pipeline_mode<synchronous>, transform_indices = @transform_2, window_bounds = array<i64: 32, 1>}, {pipeline_mode = #tpu.pipeline_mode<synchronous>, transform_indices = @transform_3, window_bounds = array<i64: 32, 32>}, {pipeline_mode = #tpu.pipeline_mode<synchronous>, transform_indices = @transform_4, window_bounds = array<i64: 32, 1>}, {pipeline_mode = #tpu.pipeline_mode<synchronous>, transform_indices = @transform_5, window_bounds = array<i64: 8, 32>}, {pipeline_mode = #tpu.pipeline_mode<synchronous>, transform_indices = @transform_6, window_bounds = array<i64: 8, 1>}, {transform_indices = @transform_7, window_bounds = array<i64: 256, 8>}]} {
    %c0 = arith.constant 0 : index
    %c0_0 = arith.constant 0 : index
    %0 = vector.load %arg1[%c0, %c0_0] : memref<256x16xf32, #tpu.memory_space<vmem>>, vector<256x16xf32>
    %1 = tpu.transpose %0, [1, 0] : vector<256x16xf32> -> vector<16x256xf32>
    %c0_1 = arith.constant 0 : index
    %c0_2 = arith.constant 0 : index
    %2 = vector.load %arg2[%c0_1, %c0_2] : memref<32x16xf32, #tpu.memory_space<vmem>>, vector<32x16xf32>
    %cst = arith.constant dense<0.000000e+00> : vector<32x256xf32>
    %3 = tpu.matmul %2, %1, %cst {dimension_numbers = #tpu.dot_dimension_numbers<[1], [0], [0], [1], [0, 0, 1, 1], [], []>} : vector<32x16xf32>, vector<16x256xf32>, vector<32x256xf32> -> vector<32x256xf32>
    %c0_3 = arith.constant 0 : index
    %c0_4 = arith.constant 0 : index
    %4 = vector.load %arg3[%c0_3, %c0_4] : memref<32x1xf32, #tpu.memory_space<vmem>>, vector<32x1xf32>
    %5 = vector.broadcast %4 : vector<32x1xf32> to vector<32x256xf32>
    %6 = arith.addf %3, %5 : vector<32x256xf32>
    %7 = math.tanh %6 : vector<32x256xf32>
    %c0_5 = arith.constant 0 : index
    %c0_6 = arith.constant 0 : index
    %8 = vector.load %arg4[%c0_5, %c0_6] : memref<32x32xf32, #tpu.memory_space<vmem>>, vector<32x32xf32>
    %cst_7 = arith.constant dense<0.000000e+00> : vector<32x256xf32>
    %9 = tpu.matmul %8, %7, %cst_7 {dimension_numbers = #tpu.dot_dimension_numbers<[1], [0], [0], [1], [0, 0, 1, 1], [], []>} : vector<32x32xf32>, vector<32x256xf32>, vector<32x256xf32> -> vector<32x256xf32>
    %c0_8 = arith.constant 0 : index
    %c0_9 = arith.constant 0 : index
    %10 = vector.load %arg5[%c0_8, %c0_9] : memref<32x1xf32, #tpu.memory_space<vmem>>, vector<32x1xf32>
    %11 = vector.broadcast %10 : vector<32x1xf32> to vector<32x256xf32>
    %12 = arith.addf %9, %11 : vector<32x256xf32>
    %13 = math.tanh %12 : vector<32x256xf32>
    %c0_10 = arith.constant 0 : index
    %c0_11 = arith.constant 0 : index
    %14 = vector.load %arg6[%c0_10, %c0_11] : memref<8x32xf32, #tpu.memory_space<vmem>>, vector<8x32xf32>
    %cst_12 = arith.constant dense<0.000000e+00> : vector<8x256xf32>
    %15 = tpu.matmul %14, %13, %cst_12 {dimension_numbers = #tpu.dot_dimension_numbers<[1], [0], [0], [1], [0, 0, 1, 1], [], []>} : vector<8x32xf32>, vector<32x256xf32>, vector<8x256xf32> -> vector<8x256xf32>
    %c0_13 = arith.constant 0 : index
    %c0_14 = arith.constant 0 : index
    %16 = vector.load %arg7[%c0_13, %c0_14] : memref<8x1xf32, #tpu.memory_space<vmem>>, vector<8x1xf32>
    %17 = vector.broadcast %16 : vector<8x1xf32> to vector<8x256xf32>
    %18 = arith.addf %15, %17 : vector<8x256xf32>
    %19 = math.tanh %18 : vector<8x256xf32>
    %20 = tpu.transpose %19, [1, 0] : vector<8x256xf32> -> vector<256x8xf32>
    %c0_15 = arith.constant 0 : index
    %c0_16 = arith.constant 0 : index
    %21 = vector.load %arg8[%c0_15, %c0_16] : memref<256x8xf32, #tpu.memory_space<vmem>>, vector<256x8xf32>
    tpu.vector_store %arg8[%c0_15, %c0_16], %20 {strides = array<i32>} : memref<256x8xf32, #tpu.memory_space<vmem>>, vector<256x8xf32>,
    return
  }
  func.func @transform_0(%arg0: i32) -> (i32, i32) {
    %c0_i32 = arith.constant 0 : i32
    %c0_i32_0 = arith.constant 0 : i32
    return %arg0, %c0_i32 : i32, i32
  }
  func.func @transform_1(%arg0: i32) -> (i32, i32) {
    %c0_i32 = arith.constant 0 : i32
    %c0_i32_0 = arith.constant 0 : i32
    %c0_i32_1 = arith.constant 0 : i32
    return %c0_i32, %c0_i32_0 : i32, i32
  }
  func.func @transform_2(%arg0: i32) -> (i32, i32) {
    %c0_i32 = arith.constant 0 : i32
    %c0_i32_0 = arith.constant 0 : i32
    %c0_i32_1 = arith.constant 0 : i32
    return %c0_i32, %c0_i32_0 : i32, i32
  }
  func.func @transform_3(%arg0: i32) -> (i32, i32) {
    %c0_i32 = arith.constant 0 : i32
    %c0_i32_0 = arith.constant 0 : i32
    %c0_i32_1 = arith.constant 0 : i32
    return %c0_i32, %c0_i32_0 : i32, i32
  }
  func.func @transform_4(%arg0: i32) -> (i32, i32) {
    %c0_i32 = arith.constant 0 : i32
    %c0_i32_0 = arith.constant 0 : i32
    %c0_i32_1 = arith.constant 0 : i32
    return %c0_i32, %c0_i32_0 : i32, i32
  }
  func.func @transform_5(%arg0: i32) -> (i32, i32) {
    %c0_i32 = arith.constant 0 : i32
    %c0_i32_0 = arith.constant 0 : i32
    %c0_i32_1 = arith.constant 0 : i32
    return %c0_i32, %c0_i32_0 : i32, i32
  }
  func.func @transform_6(%arg0: i32) -> (i32, i32) {
    %c0_i32 = arith.constant 0 : i32
    %c0_i32_0 = arith.constant 0 : i32
    %c0_i32_1 = arith.constant 0 : i32
    return %c0_i32, %c0_i32_0 : i32, i32
  }
  func.func @transform_7(%arg0: i32) -> (i32, i32) {
    %c0_i32 = arith.constant 0 : i32
    %c0_i32_0 = arith.constant 0 : i32
    return %arg0, %c0_i32 : i32, i32
  }
}

</mosaic_0001>

<llo_original>
// kernel: tpu_custom_call.1
$region0: #{tpu_custom_call.1}
  #allocation0 [shape = 'u32[]', space=smem, size = 0x4, offset = 0x4, fixed_abs, tag = 'smem constant byte address 0x4 - core index']
  #allocation1 [shape = 'u32[144,128]{1,0:T(1,128)}', space=vmem, size = 0x12000, scoped, tag = 'internal scratch']
  %s0 = inlined_call_operand.vmem [shape: f32[300,16], index: 0, kind: input, shape index: {}]
  %s1 = inlined_call_operand.vmem [shape: f32[32,16], index: 1, kind: input, shape index: {}]
  %s2 = inlined_call_operand.vmem [shape: f32[32,1], index: 2, kind: input, shape index: {}]
  %s3 = inlined_call_operand.vmem [shape: f32[32,32], index: 3, kind: input, shape index: {}]
  %s4 = inlined_call_operand.vmem [shape: f32[32,1], index: 4, kind: input, shape index: {}]
  %s5 = inlined_call_operand.vmem [shape: f32[8,32], index: 5, kind: input, shape index: {}]
  %s6 = inlined_call_operand.vmem [shape: f32[8,1], index: 6, kind: input, shape index: {}]
  %s7 = inlined_call_operand.vmem [shape: f32[300,8], index: 7, kind: output, shape index: {}]
  %s8 = sld [smem:[#allocation0]]
  $region109: #{tpu_custom_call.1} parent=0
    _
  %s10 = ssub.s32 1, %s8
  %s11 = scalar_select 0, %s10, %s8
  $region1: #{tpu_custom_call.1} parent=0
    #allocation2 [shape = 'u8[262144]{0}', space=vmem, size = 0x40000, scoped, tag = 'output window, operand 0']
    loop: start=0, step=1, limit=4
    $region2: #{tpu_custom_call.1} parent=1 // loop_pre_header
      _
    $region3: #{tpu_custom_call.1} parent=1 // loop_header
      %s13 = sphi 0, %s17
      %p14 = scmp.ge.s32.totalorder %s13, 4
      %s23 = sphi 0, %s25
      %s26 = sphi 0, %s23
      %s27 = sphi 0, %s26
      %s43 = sphi 0, %s27
      %s47 = sphi 0, %s47
      %s49 = sphi 0, %s47
      %s50 = sphi 0, %s49
      %s64 = sphi 0, %s50
      %s68 = sphi 0, %s68
      %s70 = sphi 0, %s68
      %s71 = sphi 0, %s70
      %s85 = sphi 0, %s71
      %s89 = sphi 0, %s89
      %s91 = sphi 0, %s89
      %s92 = sphi 0, %s91
      %s106 = sphi 0, %s92
      %s110 = sphi 0, %s110
      %s112 = sphi 0, %s110
      %s113 = sphi 0, %s112
      %s127 = sphi 0, %s113
      %s131 = sphi 0, %s131
      %s133 = sphi 0, %s131
      %s134 = sphi 0, %s133
      %s148 = sphi 0, %s134
      %s152 = sphi 0, %s152
      %s154 = sphi 0, %s152
      %s155 = sphi 0, %s154
      %s169 = sphi 0, %s155
      %s175 = sphi 0, %s177
      %s178 = sphi 0, %s175
      %s179 = sphi 0, %s178
      %s195 = sphi 0, %s179
    $region4: #{tpu_custom_call.1} parent=1 // loop_header_branch
      %16 = sbr.rel (%p14) target = $region8
    $region5: #{tpu_custom_call.1} parent=1 // loop_body
      %s18 = ssub.s32 %s13, 1
      %s19 = ssub.s32 %s13, 2
      %s20 = sadd.s32 %s13, 1
      %s21 = ssub.s32 %s13, %s20
      %p22 = scmp.eq.s32.totalorder %s21, 0
      %s24 = sadd.s32 %s23, 1
      %s25 = scalar_select %p22, %s23, %s24
      %p28 = pneg %p22
      %p29 = scmp.eq.s32.totalorder %s13, 1
      %p30 = por %p28, %p29
      %p31 = scmp.ne.s32.totalorder %s23, %s26
      %p32 = scmp.eq.s32.totalorder %s13, 0
      %p33 = por %p31, %p32
      %p34 = scmp.ne.s32.totalorder %s23, %s26
      %p35 = scmp.eq.s32.totalorder %s18, 1
      %p36 = por %p34, %p35
      %p37 = scmp.ne.s32.totalorder %s26, %s27
      %p38 = scmp.eq.s32.totalorder %s18, 0
      %p39 = por %p37, %p38
      %p40 = scmp.ne.s32.totalorder %s26, %s27
      %p41 = scmp.eq.s32.totalorder %s19, 1
      %p42 = por %p40, %p41
      %p44 = scmp.ne.s32.totalorder %s27, %s43
      %p45 = scmp.eq.s32.totalorder %s19, 0
      %p46 = por %p44, %p45
      %s48 = sadd.s32 %s47, 1
      %p51 = scmp.eq.s32.totalorder %s13, 1
      %p52 = scmp.ne.s32.totalorder %s47, %s49
      %p53 = scmp.eq.s32.totalorder %s13, 0
      %p54 = por %p52, %p53
      %p55 = scmp.ne.s32.totalorder %s47, %s49
      %p56 = scmp.eq.s32.totalorder %s18, 1
      %p57 = por %p55, %p56
      %p58 = scmp.ne.s32.totalorder %s49, %s50
      %p59 = scmp.eq.s32.totalorder %s18, 0
      %p60 = por %p58, %p59
      %p61 = scmp.ne.s32.totalorder %s49, %s50
      %p62 = scmp.eq.s32.totalorder %s19, 1
      %p63 = por %p61, %p62
      %p65 = scmp.ne.s32.totalorder %s50, %s64
      %p66 = scmp.eq.s32.totalorder %s19, 0
      %p67 = por %p65, %p66
      %s69 = sadd.s32 %s68, 1
      %p72 = scmp.eq.s32.totalorder %s13, 1
      %p73 = scmp.ne.s32.totalorder %s68, %s70
      %p74 = scmp.eq.s32.totalorder %s13, 0
      %p75 = por %p73, %p74
      %p76 = scmp.ne.s32.totalorder %s68, %s70
      %p77 = scmp.eq.s32.totalorder %s18, 1
      %p78 = por %p76, %p77
      %p79 = scmp.ne.s32.totalorder %s70, %s71
      %p80 = scmp.eq.s32.totalorder %s18, 0
      %p81 = por %p79, %p80
      %p82 = scmp.ne.s32.totalorder %s70, %s71
      %p83 = scmp.eq.s32.totalorder %s19, 1
      %p84 = por %p82, %p83
      %p86 = scmp.ne.s32.totalorder %s71, %s85
      %p87 = scmp.eq.s32.totalorder %s19, 0
      %p88 = por %p86, %p87
      %s90 = sadd.s32 %s89, 1
      %p93 = scmp.eq.s32.totalorder %s13, 1
      %p94 = scmp.ne.s32.totalorder %s89, %s91
      %p95 = scmp.eq.s32.totalorder %s13, 0
      %p96 = por %p94, %p95
      %p97 = scmp.ne.s32.totalorder %s89, %s91
      %p98 = scmp.eq.s32.totalorder %s18, 1
      %p99 = por %p97, %p98
      %p100 = scmp.ne.s32.totalorder %s91, %s92
      %p101 = scmp.eq.s32.totalorder %s18, 0
      %p102 = por %p100, %p101
      %p103 = scmp.ne.s32.totalorder %s91, %s92
      %p104 = scmp.eq.s32.totalorder %s19, 1
      %p105 = por %p103, %p104
      %p107 = scmp.ne.s32.totalorder %s92, %s106
      %p108 = scmp.eq.s32.totalorder %s19, 0
      %p109 = por %p107, %p108
      %s111 = sadd.s32 %s110, 1
      %p114 = scmp.eq.s32.totalorder %s13, 1
      %p115 = scmp.ne.s32.totalorder %s110, %s112
      %p116 = scmp.eq.s32.totalorder %s13, 0
      %p117 = por %p115, %p116
      %p118 = scmp.ne.s32.totalorder %s110, %s112
      %p119 = scmp.eq.s32.totalorder %s18, 1
      %p120 = por %p118, %p119
      %p121 = scmp.ne.s32.totalorder %s112, %s113
      %p122 = scmp.eq.s32.totalorder %s18, 0
      %p123 = por %p121, %p122
      %p124 = scmp.ne.s32.totalorder %s112, %s113
      %p125 = scmp.eq.s32.totalorder %s19, 1
      %p126 = por %p124, %p125
      %p128 = scmp.ne.s32.totalorder %s113, %s127
      %p129 = scmp.eq.s32.totalorder %s19, 0
      %p130 = por %p128, %p129
      %s132 = sadd.s32 %s131, 1
      %p135 = scmp.eq.s32.totalorder %s13, 1
      %p136 = scmp.ne.s32.totalorder %s131, %s133
      %p137 = scmp.eq.s32.totalorder %s13, 0
      %p138 = por %p136, %p137
      %p139 = scmp.ne.s32.totalorder %s131, %s133
      %p140 = scmp.eq.s32.totalorder %s18, 1
      %p141 = por %p139, %p140
      %p142 = scmp.ne.s32.totalorder %s133, %s134
      %p143 = scmp.eq.s32.totalorder %s18, 0
      %p144 = por %p142, %p143
      %p145 = scmp.ne.s32.totalorder %s133, %s134
      %p146 = scmp.eq.s32.totalorder %s19, 1
      %p147 = por %p145, %p146
      %p149 = scmp.ne.s32.totalorder %s134, %s148
      %p150 = scmp.eq.s32.totalorder %s19, 0
      %p151 = por %p149, %p150
      %s153 = sadd.s32 %s152, 1
      %p156 = scmp.eq.s32.totalorder %s13, 1
      %p157 = scmp.ne.s32.totalorder %s152, %s154
      %p158 = scmp.eq.s32.totalorder %s13, 0
      %p159 = por %p157, %p158
      %p160 = scmp.ne.s32.totalorder %s152, %s154
      %p161 = scmp.eq.s32.totalorder %s18, 1
      %p162 = por %p160, %p161
      %p163 = scmp.ne.s32.totalorder %s154, %s155
      %p164 = scmp.eq.s32.totalorder %s18, 0
      %p165 = por %p163, %p164
      %p166 = scmp.ne.s32.totalorder %s154, %s155
      %p167 = scmp.eq.s32.totalorder %s19, 1
      %p168 = por %p166, %p167
      %p170 = scmp.ne.s32.totalorder %s155, %s169
      %p171 = scmp.eq.s32.totalorder %s19, 0
      %p172 = por %p170, %p171
      %s173 = ssub.s32 %s13, %s20
      %p174 = scmp.eq.s32.totalorder %s173, 0
      %s176 = sadd.s32 %s175, 1
      %s177 = scalar_select %p174, %s175, %s176
      %p180 = pneg %p174
      %p181 = scmp.eq.s32.totalorder %s13, 1
      %p182 = por %p180, %p181
      %p183 = scmp.ne.s32.totalorder %s175, %s178
      %p184 = scmp.eq.s32.totalorder %s13, 0
      %p185 = por %p183, %p184
      %p186 = scmp.ne.s32.totalorder %s175, %s178
      %p187 = scmp.eq.s32.totalorder %s18, 1
      %p188 = por %p186, %p187
      %p189 = scmp.ne.s32.totalorder %s178, %s179
      %p190 = scmp.eq.s32.totalorder %s18, 0
      %p191 = por %p189, %p190
      %p192 = scmp.ne.s32.totalorder %s178, %s179
      %p193 = scmp.eq.s32.totalorder %s19, 1
      %p194 = por %p192, %p193
      %p196 = scmp.ne.s32.totalorder %s179, %s195
      %p197 = scmp.eq.s32.totalorder %s19, 0
      %p198 = por %p196, %p197
      %p199 = scmp.le.s32.totalorder 1, %s13
      %p200 = scmp.lt.s32.totalorder %s13, 3
      %p201 = pnand %p199, %p200
      %p202 = pneg %p201
      // Predicated region
      $region9: #{tpu_custom_call.1} parent=5 // pred_check
        _
      $region10: #{tpu_custom_call.1} parent=5 // pred_check_branch
        %204 = sbr.rel (%p201) target = $region12
      $region11: #{tpu_custom_call.1} parent=5 // pred_region
        %s205 = ssub.s32 %s13, 1
        // Predicated region
        $region13: #{tpu_custom_call.1} parent=11 // pred_check
          %p206 = pneg %p60
        $region14: #{tpu_custom_call.1} parent=11 // pred_check_branch
          %208 = sbr.rel (%p206) target = $region16
        $region15: #{tpu_custom_call.1} parent=11 // pred_region
          _
        $region16: #{tpu_custom_call.1} parent=11 // pred_fallthru
          _
        // Predicated region
        $region17: #{tpu_custom_call.1} parent=11 // pred_check
          %p209 = pneg %p81
        $region18: #{tpu_custom_call.1} parent=11 // pred_check_branch
          %211 = sbr.rel (%p209) target = $region20
        $region19: #{tpu_custom_call.1} parent=11 // pred_region
          _
        $region20: #{tpu_custom_call.1} parent=11 // pred_fallthru
          _
        // Predicated region
        $region21: #{tpu_custom_call.1} parent=11 // pred_check
          %p212 = pneg %p102
        $region22: #{tpu_custom_call.1} parent=11 // pred_check_branch
          %214 = sbr.rel (%p212) target = $region24
        $region23: #{tpu_custom_call.1} parent=11 // pred_region
          _
        $region24: #{tpu_custom_call.1} parent=11 // pred_fallthru
          _
        // Predicated region
        $region25: #{tpu_custom_call.1} parent=11 // pred_check
          %p215 = pneg %p123
        $region26: #{tpu_custom_call.1} parent=11 // pred_check_branch
          %217 = sbr.rel (%p215) target = $region28
        $region27: #{tpu_custom_call.1} parent=11 // pred_region
          _
        $region28: #{tpu_custom_call.1} parent=11 // pred_fallthru
          _
        // Predicated region
        $region29: #{tpu_custom_call.1} parent=11 // pred_check
          %p218 = pneg %p144
        $region30: #{tpu_custom_call.1} parent=11 // pred_check_branch
          %220 = sbr.rel (%p218) target = $region32
        $region31: #{tpu_custom_call.1} parent=11 // pred_region
          _
        $region32: #{tpu_custom_call.1} parent=11 // pred_fallthru
          _
        // Predicated region
        $region33: #{tpu_custom_call.1} parent=11 // pred_check
          %p221 = pneg %p165
        $region34: #{tpu_custom_call.1} parent=11 // pred_check_branch
          %223 = sbr.rel (%p221) target = $region36
        $region35: #{tpu_custom_call.1} parent=11 // pred_region
          _
        $region36: #{tpu_custom_call.1} parent=11 // pred_fallthru
          _
      $region12: #{tpu_custom_call.1} parent=5 // pred_fallthru
        _
      %p224 = scmp.lt.s32.totalorder %s13, 2
      // Predicated region
      $region37: #{tpu_custom_call.1} parent=5 // pred_check
        %p225 = pneg %p224
      $region38: #{tpu_custom_call.1} parent=5 // pred_check_branch
        %227 = sbr.rel (%p225) target = $region40
      $region39: #{tpu_custom_call.1} parent=5 // pred_region
        // Predicated region
        $region41: #{tpu_custom_call.1} parent=39 // pred_check
          %p228 = pneg %p33
        $region42: #{tpu_custom_call.1} parent=39 // pred_check_branch
          %230 = sbr.rel (%p228) target = $region44
        $region43: #{tpu_custom_call.1} parent=39 // pred_region
          %s231 = smul.u32 32, %s13
          %s232 = ssub.s32 38, %s231
          %p233 = scmp.lt.s32.totalorder %s232, 32
          %s234 = scalar_select %p233, %s232, 32
          %s235 = smul.u32 128, %s234
          %p236 = scmp.lt.s32.totalorder %s231, 37
          %s237 = scalar_select %p236, %s231, 37
          %s238 = smul.addr %s237, 8
          %s239 = scalar_lea.vmem %s0, %s238
          %s240 = smul.u32 32, %s13
          %s241 = ssub.s32 38, %s240
          %p242 = scmp.lt.s32.totalorder %s241, 32
          %s243 = scalar_select %p242, %s241, 32
          %s244 = smul.u32 128, %s243
        $region44: #{tpu_custom_call.1} parent=39 // pred_fallthru
          _
      $region40: #{tpu_custom_call.1} parent=5 // pred_fallthru
        _
      %p245 = scmp.le.s32.totalorder 1, %s13
      %p246 = scmp.lt.s32.totalorder %s13, 3
      %p247 = pnand %p245, %p246
      %p248 = pneg %p247
      // Predicated region
      $region45: #{tpu_custom_call.1} parent=5 // pred_check
        _
      $region46: #{tpu_custom_call.1} parent=5 // pred_check_branch
        %250 = sbr.rel (%p247) target = $region48
      $region47: #{tpu_custom_call.1} parent=5 // pred_region
        %s251 = ssub.s32 %s13, 1
        %s252 = smul.u32 32, %s18
        %s253 = ssub.s32 38, %s252
        %p254 = scmp.lt.s32.totalorder %s253, 32
        %s255 = scalar_select %p254, %s253, 32
        %s256 = smul.u32 128, %s255
        %p257 = scmp.lt.s32.totalorder %s252, 37
        %s258 = scalar_select %p257, %s252, 37
        %s259 = smul.addr %s258, 8
        %s260 = scalar_lea.vmem %s0, %s259
        %p261 = pneg %p39
        %p262 = pneg %p36
        %p263 = pneg %p60
        %p264 = pneg %p57
        %p265 = pneg %p81
        %p266 = pneg %p78
        %p267 = pneg %p102
        %p268 = pneg %p99
        %p269 = pneg %p123
        %p270 = pneg %p120
        %p271 = pneg %p144
        %p272 = pneg %p141
        %p273 = pneg %p165
        %p274 = pneg %p162
        %p275 = pneg %p191
        %p276 = pneg %p188
        %s277 = sand.u32 %s178, 1
        %s278 = sand.u32 %s178, 1
        %s279 = smul.addr %s278, 256
        %s280 = scalar_lea.vmem [#allocation2], %s279
        %s281 = smul.u32 32, %s18
        %s282 = ssub.s32 38, %s281
        %p283 = scmp.lt.s32.totalorder %s282, 32
        %s284 = scalar_select %p283, %s282, 32
        %s285 = smul.u32 128, %s284
        %p286 = scmp.lt.s32.totalorder %s281, 37
        %s287 = scalar_select %p286, %s281, 37
        %s288 = smul.addr %s287, 8
        %s289 = scalar_lea.vmem %s0, %s288
        %s290 = smul.u32 32, %s18
        %s291 = ssub.s32 38, %s290
        %p292 = scmp.lt.s32.totalorder %s291, 32
        %s293 = scalar_select %p292, %s291, 32
        %s294 = smul.u32 128, %s293
        %s295 = smul.u32 32, %s18
        %s296 = ssub.s32 38, %s295
        %p297 = scmp.lt.s32.totalorder %s296, 32
        %s298 = scalar_select %p297, %s296, 32
        %s299 = smul.u32 128, %s298
        %v300 = vld [vmem:[%s289] sm:$0xff]
        %v301 = vld [vmem:[%s289 + $0x8] sm:$0xff]
        %v302 = vld [vmem:[%s289 + $0x10] sm:$0xff]
        %v303 = vld [vmem:[%s289 + $0x18] sm:$0xff]
        %v304 = vld [vmem:[%s289 + $0x20] sm:$0xff]
        %v305 = vld [vmem:[%s289 + $0x28] sm:$0xff]
        %v306 = vld [vmem:[%s289 + $0x30] sm:$0xff]
        %v307 = vld [vmem:[%s289 + $0x38] sm:$0xff]
        %v308 = vld [vmem:[%s289 + $0x40] sm:$0xff]
        %v309 = vld [vmem:[%s289 + $0x48] sm:$0xff]
        %v310 = vld [vmem:[%s289 + $0x50] sm:$0xff]
        %v311 = vld [vmem:[%s289 + $0x58] sm:$0xff]
        %v312 = vld [vmem:[%s289 + $0x60] sm:$0xff]
        %v313 = vld [vmem:[%s289 + $0x68] sm:$0xff]
        %v314 = vld [vmem:[%s289 + $0x70] sm:$0xff]
        %v315 = vld [vmem:[%s289 + $0x78] sm:$0xff]
        %v316 = vld [vmem:[%s289 + $0x80] sm:$0xff]
        %v317 = vld [vmem:[%s289 + $0x88] sm:$0xff]
        %v318 = vld [vmem:[%s289 + $0x90] sm:$0xff]
        %v319 = vld [vmem:[%s289 + $0x98] sm:$0xff]
        %v320 = vld [vmem:[%s289 + $0xa0] sm:$0xff]
        %v321 = vld [vmem:[%s289 + $0xa8] sm:$0xff]
        %v322 = vld [vmem:[%s289 + $0xb0] sm:$0xff]
        %v323 = vld [vmem:[%s289 + $0xb8] sm:$0xff]
        %v324 = vld [vmem:[%s289 + $0xc0] sm:$0xff]
        %v325 = vld [vmem:[%s289 + $0xc8] sm:$0xff]
        %v326 = vld [vmem:[%s289 + $0xd0] sm:$0xff]
        %v327 = vld [vmem:[%s289 + $0xd8] sm:$0xff]
        %v328 = vld [vmem:[%s289 + $0xe0] sm:$0xff]
        %v329 = vld [vmem:[%s289 + $0xe8] sm:$0xff]
        %v330 = vld [vmem:[%s289 + $0xf0] sm:$0xff]
        %v331 = vld [vmem:[%s289 + $0xf8] sm:$0xff]
        %v332 = vld [vmem:[%s1] sm:$0xff]
        %v333 = vld [vmem:[%s1 + $0x8] sm:$0xff]
        %v334 = vld [vmem:[%s1 + $0x10] sm:$0xff]
        %v335 = vld [vmem:[%s1 + $0x18] sm:$0xff]
        %v336 = vld [vmem:[%s2] sm:$0xff]
        %v337 = vld [vmem:[%s2 + $0x8] sm:$0xff]
        %v338 = vld [vmem:[%s2 + $0x10] sm:$0xff]
        %v339 = vld [vmem:[%s2 + $0x18] sm:$0xff]
        %341 = vset.pattern.permute.xlu0 0
        %342 = vperm.xlu0 %341, %v336
        %v343 = vpop.permute.xlu0 %342
        %346 = vset.pattern.permute.xlu0 0
        %347 = vperm.xlu0 %346, %v337
        %v348 = vpop.permute.xlu0 %347
        %351 = vset.pattern.permute.xlu0 0
        %352 = vperm.xlu0 %351, %v338
        %v353 = vpop.permute.xlu0 %352
        %356 = vset.pattern.permute.xlu0 0
        %357 = vperm.xlu0 %356, %v339
        %v358 = vpop.permute.xlu0 %357
        %vm360 = vcmask 130048
        %v362 = vsel %vm360, %v332, 0
        %v365 = vsel %vm360, %v333, 0
        %v368 = vsel %vm360, %v334, 0
        %v371 = vsel %vm360, %v335, 0
        %v374 = vsel %vm360, %v300, 0
        %v377 = vsel %vm360, %v301, 0
        %v380 = vsel %vm360, %v302, 0
        %v383 = vsel %vm360, %v303, 0
        %v386 = vsel %vm360, %v304, 0
        %v389 = vsel %vm360, %v305, 0
        %v392 = vsel %vm360, %v306, 0
        %v395 = vsel %vm360, %v307, 0
        %v398 = vsel %vm360, %v308, 0
        %v401 = vsel %vm360, %v309, 0
        %v404 = vsel %vm360, %v310, 0
        %v407 = vsel %vm360, %v311, 0
        %v410 = vsel %vm360, %v312, 0
        %v413 = vsel %vm360, %v313, 0
        %v416 = vsel %vm360, %v314, 0
        %v419 = vsel %vm360, %v315, 0
        %v422 = vsel %vm360, %v316, 0
        %v425 = vsel %vm360, %v317, 0
        %v428 = vsel %vm360, %v318, 0
        %v431 = vsel %vm360, %v319, 0
        %v434 = vsel %vm360, %v320, 0
        %v437 = vsel %vm360, %v321, 0
        %v440 = vsel %vm360, %v322, 0
        %v443 = vsel %vm360, %v323, 0
        %v446 = vsel %vm360, %v324, 0
        %v449 = vsel %vm360, %v325, 0
        %v452 = vsel %vm360, %v326, 0
        %v455 = vsel %vm360, %v327, 0
        %v458 = vsel %vm360, %v328, 0
        %v461 = vsel %vm360, %v329, 0
        %v464 = vsel %vm360, %v330, 0
        %v467 = vsel %vm360, %v331, 0
        %469 = vmatprep.subr.mxu0 0.0
        %470 = vmatpush1.xpose.msra.mxu0 %v419
        %471 = vmatprep.subr.mxu0 0.0
        %472 = vmatpush1.xpose.msra.mxu0 %v416
        %473 = vmatprep.subr.mxu0 0.0
        %474 = vmatpush1.xpose.msra.mxu0 %v413
        %475 = vmatprep.subr.mxu0 0.0
        %476 = vmatpush1.xpose.msra.mxu0 %v410
        %477 = vmatprep.subr.mxu0 0.0
        %478 = vmatpush1.xpose.msra.mxu0 %v407
        %479 = vmatprep.subr.mxu0 0.0
        %480 = vmatpush1.xpose.msra.mxu0 %v404
        %481 = vmatprep.subr.mxu0 0.0
        %482 = vmatpush1.xpose.msra.mxu0 %v401
        %483 = vmatprep.subr.mxu0 0.0
        %484 = vmatpush1.xpose.msra.mxu0 %v398
        %485 = vmatprep.subr.mxu0 0.0
        %486 = vmatpush1.xpose.msra.mxu0 %v395
        %487 = vmatprep.subr.mxu0 0.0
        %488 = vmatpush1.xpose.msra.mxu0 %v392
        %489 = vmatprep.subr.mxu0 0.0
        %490 = vmatpush1.xpose.msra.mxu0 %v389
        %491 = vmatprep.subr.mxu0 0.0
        %492 = vmatpush1.xpose.msra.mxu0 %v386
        %493 = vmatprep.subr.mxu0 0.0
        %494 = vmatpush1.xpose.msra.mxu0 %v383
        %495 = vmatprep.subr.mxu0 0.0
        %496 = vmatpush1.xpose.msra.mxu0 %v380
        %497 = vmatprep.subr.mxu0 0.0
        %498 = vmatpush1.xpose.msra.mxu0 %v377
        %499 = vmatprep.subr.mxu0 0.0
        %500 = vmatpush1.xpose.msra.mxu0 %v374
        %501 = vmatprep.subr.mxu0 0.0
        %502 = vmatpush2.xpose.msra.mxu0 %v467
        %503 = vmatprep.subr.mxu0 0.0
        %504 = vmatpush2.xpose.msra.mxu0 %v464
        %505 = vmatprep.subr.mxu0 0.0
        %506 = vmatpush2.xpose.msra.mxu0 %v461
        %507 = vmatprep.subr.mxu0 0.0
        %508 = vmatpush2.xpose.msra.mxu0 %v458
        %509 = vmatprep.subr.mxu0 0.0
        %510 = vmatpush2.xpose.msra.mxu0 %v455
        %511 = vmatprep.subr.mxu0 0.0
        %512 = vmatpush2.xpose.msra.mxu0 %v452
        %513 = vmatprep.subr.mxu0 0.0
        %514 = vmatpush2.xpose.msra.mxu0 %v449
        %515 = vmatprep.subr.mxu0 0.0
        %516 = vmatpush2.xpose.msra.mxu0 %v446
        %517 = vmatprep.subr.mxu0 0.0
        %518 = vmatpush2.xpose.msra.mxu0 %v443
        %519 = vmatprep.subr.mxu0 0.0
        %520 = vmatpush2.xpose.msra.mxu0 %v440
        %521 = vmatprep.subr.mxu0 0.0
        %522 = vmatpush2.xpose.msra.mxu0 %v437
        %523 = vmatprep.subr.mxu0 0.0
        %524 = vmatpush2.xpose.msra.mxu0 %v434
        %525 = vmatprep.subr.mxu0 0.0
        %526 = vmatpush2.xpose.msra.mxu0 %v431
        %527 = vmatprep.subr.mxu0 0.0
        %528 = vmatpush2.xpose.msra.mxu0 %v428
        %529 = vmatprep.subr.mxu0 0.0
        %530 = vmatpush2.xpose.msra.mxu0 %v425
        %531 = vmatprep.subr.mxu0 0.0
        %532 = vmatpush2.xpose.msra.mxu0 %v422
        %533 = vmatprep.mubr.f32.mxu0 0.0
        %534 = vmatmul.mubr.f32.gmra.mxu0 %v362
        %v535 = vpop.f32.mrf.mxu0
        %v536 = vadd.f32 %v343, %v535
        %v537 = vpop.f32.mrf.mxu0
        %v538 = vadd.f32 %v343, %v537
        %539 = vmatprep.mubr.f32.mxu0 0.0
        %540 = vmatmul.mubr.f32.gmra.mxu0 %v365
        %v541 = vpop.f32.mrf.mxu0
        %v542 = vadd.f32 %v348, %v541
        %v543 = vpop.f32.mrf.mxu0
        %v544 = vadd.f32 %v348, %v543
        %545 = vmatprep.mubr.f32.mxu0 0.0
        %546 = vmatmul.mubr.f32.gmra.mxu0 %v368
        %v547 = vpop.f32.mrf.mxu0
        %v548 = vadd.f32 %v353, %v547
        %v549 = vpop.f32.mrf.mxu0
        %v550 = vadd.f32 %v353, %v549
        %551 = vmatprep.mubr.f32.mxu0 0.0
        %552 = vmatmul.mubr.f32.gmra.mxu0 %v371
        %v553 = vpop.f32.mrf.mxu0
        %v554 = vadd.f32 %v358, %v553
        %v555 = vpop.f32.mrf.mxu0
        %v556 = vadd.f32 %v358, %v555
        %557 = vdwg.mxu0
        %v558 = vtanh.pop %v536
        %v559 = vtanh.pop %v538
        %v560 = vtanh.pop %v542
        %v561 = vtanh.pop %v544
        %v562 = vtanh.pop %v548
        %v563 = vtanh.pop %v550
        %v564 = vtanh.pop %v554
        %v565 = vtanh.pop %v556
        %v566 = vld [vmem:[%s3] sm:$0xff]
        %v567 = vld [vmem:[%s3 + $0x8] sm:$0xff]
        %v568 = vld [vmem:[%s3 + $0x10] sm:$0xff]
        %v569 = vld [vmem:[%s3 + $0x18] sm:$0xff]
        %v570 = vld [vmem:[%s4] sm:$0xff]
        %v571 = vld [vmem:[%s4 + $0x8] sm:$0xff]
        %v572 = vld [vmem:[%s4 + $0x10] sm:$0xff]
        %v573 = vld [vmem:[%s4 + $0x18] sm:$0xff]
        %575 = vset.pattern.permute.xlu0 0
        %576 = vperm.xlu0 %575, %v570
        %v577 = vpop.permute.xlu0 %576
        %580 = vset.pattern.permute.xlu0 0
        %581 = vperm.xlu0 %580, %v571
        %v582 = vpop.permute.xlu0 %581
        %585 = vset.pattern.permute.xlu0 0
        %586 = vperm.xlu0 %585, %v572
        %v587 = vpop.permute.xlu0 %586
        %590 = vset.pattern.permute.xlu0 0
        %591 = vperm.xlu0 %590, %v573
        %v592 = vpop.permute.xlu0 %591
        %vm594 = vcmask 261120
        %v596 = vsel %vm594, %v566, 0
        %v599 = vsel %vm594, %v567, 0
        %v602 = vsel %vm594, %v568, 0
        %v605 = vsel %vm594, %v569, 0
        %607 = vmatprep.subr.mxu0 0.0
        %608 = vmatpush1.msra.mxu0 0.0
        %609 = vmatprep.subr.mxu0 0.0
        %610 = vmatpush1.msra.mxu0 0.0
        %611 = vmatprep.subr.mxu0 0.0
        %612 = vmatpush1.msra.mxu0 0.0
        %613 = vmatprep.subr.mxu0 0.0
        %614 = vmatpush1.msra.mxu0 0.0
        %615 = vmatprep.subr.mxu0 0.0
        %616 = vmatpush1.msra.mxu0 0.0
        %617 = vmatprep.subr.mxu0 0.0
        %618 = vmatpush1.msra.mxu0 0.0
        %619 = vmatprep.subr.mxu0 0.0
        %620 = vmatpush1.msra.mxu0 0.0
        %621 = vmatprep.subr.mxu0 0.0
        %622 = vmatpush1.msra.mxu0 0.0
        %623 = vmatprep.subr.mxu0 0.0
        %624 = vmatpush1.msra.mxu0 0.0
        %625 = vmatprep.subr.mxu0 0.0
        %626 = vmatpush1.msra.mxu0 0.0
        %627 = vmatprep.subr.mxu0 0.0
        %628 = vmatpush1.msra.mxu0 0.0
        %629 = vmatprep.subr.mxu0 0.0
        %630 = vmatpush1.msra.mxu0 0.0
        %631 = vmatprep.subr.mxu0 %v565
        %632 = vmatpush1.msra.mxu0 %v564
        %633 = vmatprep.subr.mxu0 %v563
        %634 = vmatpush1.msra.mxu0 %v562
        %635 = vmatprep.subr.mxu0 %v561
        %636 = vmatpush1.msra.mxu0 %v560
        %637 = vmatprep.subr.mxu0 %v559
        %638 = vmatpush1.msra.mxu0 %v558
        %639 = vmatprep.subr.mxu0 0.0
        %640 = vmatpush2.msra.mxu0 0.0
        %641 = vmatprep.subr.mxu0 0.0
        %642 = vmatpush2.msra.mxu0 0.0
        %643 = vmatprep.subr.mxu0 0.0
        %644 = vmatpush2.msra.mxu0 0.0
        %645 = vmatprep.subr.mxu0 0.0
        %646 = vmatpush2.msra.mxu0 0.0
        %647 = vmatprep.subr.mxu0 0.0
        %648 = vmatpush2.msra.mxu0 0.0
        %649 = vmatprep.subr.mxu0 0.0
        %650 = vmatpush2.msra.mxu0 0.0
        %651 = vmatprep.subr.mxu0 0.0
        %652 = vmatpush2.msra.mxu0 0.0
        %653 = vmatprep.subr.mxu0 0.0
        %654 = vmatpush2.msra.mxu0 0.0
        %655 = vmatprep.subr.mxu0 0.0
        %656 = vmatpush2.msra.mxu0 0.0
        %657 = vmatprep.subr.mxu0 0.0
        %658 = vmatpush2.msra.mxu0 0.0
        %659 = vmatprep.subr.mxu0 0.0
        %660 = vmatpush2.msra.mxu0 0.0
        %661 = vmatprep.subr.mxu0 0.0
        %662 = vmatpush2.msra.mxu0 0.0
        %663 = vmatprep.subr.mxu0 0.0
        %664 = vmatpush2.msra.mxu0 0.0
        %665 = vmatprep.subr.mxu0 0.0
        %666 = vmatpush2.msra.mxu0 0.0
        %667 = vmatprep.subr.mxu0 0.0
        %668 = vmatpush2.msra.mxu0 0.0
        %669 = vmatprep.subr.mxu0 0.0
        %670 = vmatpush2.msra.mxu0 0.0
        %671 = vmatprep.mubr.f32.mxu0 0.0
        %672 = vmatmul.mubr.f32.gmra.mxu0 %v596
        %v673 = vpop.f32.mrf.mxu0
        %v674 = vadd.f32 %v577, %v673
        %v675 = vpop.f32.mrf.mxu0
        %v676 = vadd.f32 %v577, %v675
        %677 = vmatprep.mubr.f32.mxu0 0.0
        %678 = vmatmul.mubr.f32.gmra.mxu0 %v599
        %v679 = vpop.f32.mrf.mxu0
        %v680 = vadd.f32 %v582, %v679
        %v681 = vpop.f32.mrf.mxu0
        %v682 = vadd.f32 %v582, %v681
        %683 = vmatprep.mubr.f32.mxu0 0.0
        %684 = vmatmul.mubr.f32.gmra.mxu0 %v602
        %v685 = vpop.f32.mrf.mxu0
        %v686 = vadd.f32 %v587, %v685
        %v687 = vpop.f32.mrf.mxu0
        %v688 = vadd.f32 %v587, %v687
        %689 = vmatprep.mubr.f32.mxu0 0.0
        %690 = vmatmul.mubr.f32.gmra.mxu0 %v605
        %v691 = vpop.f32.mrf.mxu0
        %v692 = vadd.f32 %v592, %v691
        %v693 = vpop.f32.mrf.mxu0
        %v694 = vadd.f32 %v592, %v693
        %695 = vdwg.mxu0
        %v696 = vtanh.pop %v674
        %v697 = vtanh.pop %v676
        %v698 = vtanh.pop %v680
        %v699 = vtanh.pop %v682
        %v700 = vtanh.pop %v686
        %v701 = vtanh.pop %v688
        %v702 = vtanh.pop %v692
        %v703 = vtanh.pop %v694
        %v704 = vld [vmem:[%s5] sm:$0xff]
        %v705 = vld [vmem:[%s6] sm:$0xff]
        %707 = vset.pattern.permute.xlu0 0
        %708 = vperm.xlu0 %707, %v705
        %v709 = vpop.permute.xlu0 %708
        %v712 = vsel %vm594, %v704, 0
        %714 = vmatprep.subr.mxu0 0.0
        %715 = vmatpush1.msra.mxu0 0.0
        %716 = vmatprep.subr.mxu0 0.0
        %717 = vmatpush1.msra.mxu0 0.0
        %718 = vmatprep.subr.mxu0 0.0
        %719 = vmatpush1.msra.mxu0 0.0
        %720 = vmatprep.subr.mxu0 0.0
        %721 = vmatpush1.msra.mxu0 0.0
        %722 = vmatprep.subr.mxu0 0.0
        %723 = vmatpush1.msra.mxu0 0.0
        %724 = vmatprep.subr.mxu0 0.0
        %725 = vmatpush1.msra.mxu0 0.0
        %726 = vmatprep.subr.mxu0 0.0
        %727 = vmatpush1.msra.mxu0 0.0
        %728 = vmatprep.subr.mxu0 0.0
        %729 = vmatpush1.msra.mxu0 0.0
        %730 = vmatprep.subr.mxu0 0.0
        %731 = vmatpush1.msra.mxu0 0.0
        %732 = vmatprep.subr.mxu0 0.0
        %733 = vmatpush1.msra.mxu0 0.0
        %734 = vmatprep.subr.mxu0 0.0
        %735 = vmatpush1.msra.mxu0 0.0
        %736 = vmatprep.subr.mxu0 0.0
        %737 = vmatpush1.msra.mxu0 0.0
        %738 = vmatprep.subr.mxu0 %v703
        %739 = vmatpush1.msra.mxu0 %v702
        %740 = vmatprep.subr.mxu0 %v701
        %741 = vmatpush1.msra.mxu0 %v700
        %742 = vmatprep.subr.mxu0 %v699
        %743 = vmatpush1.msra.mxu0 %v698
        %744 = vmatprep.subr.mxu0 %v697
        %745 = vmatpush1.msra.mxu0 %v696
        %746 = vmatprep.subr.mxu0 0.0
        %747 = vmatpush2.msra.mxu0 0.0
        %748 = vmatprep.subr.mxu0 0.0
        %749 = vmatpush2.msra.mxu0 0.0
        %750 = vmatprep.subr.mxu0 0.0
        %751 = vmatpush2.msra.mxu0 0.0
        %752 = vmatprep.subr.mxu0 0.0
        %753 = vmatpush2.msra.mxu0 0.0
        %754 = vmatprep.subr.mxu0 0.0
        %755 = vmatpush2.msra.mxu0 0.0
        %756 = vmatprep.subr.mxu0 0.0
        %757 = vmatpush2.msra.mxu0 0.0
        %758 = vmatprep.subr.mxu0 0.0
        %759 = vmatpush2.msra.mxu0 0.0
        %760 = vmatprep.subr.mxu0 0.0
        %761 = vmatpush2.msra.mxu0 0.0
        %762 = vmatprep.subr.mxu0 0.0
        %763 = vmatpush2.msra.mxu0 0.0
        %764 = vmatprep.subr.mxu0 0.0
        %765 = vmatpush2.msra.mxu0 0.0
        %766 = vmatprep.subr.mxu0 0.0
        %767 = vmatpush2.msra.mxu0 0.0
        %768 = vmatprep.subr.mxu0 0.0
        %769 = vmatpush2.msra.mxu0 0.0
        %770 = vmatprep.subr.mxu0 0.0
        %771 = vmatpush2.msra.mxu0 0.0
        %772 = vmatprep.subr.mxu0 0.0
        %773 = vmatpush2.msra.mxu0 0.0
        %774 = vmatprep.subr.mxu0 0.0
        %775 = vmatpush2.msra.mxu0 0.0
        %776 = vmatprep.subr.mxu0 0.0
        %777 = vmatpush2.msra.mxu0 0.0
        %778 = vmatprep.mubr.f32.mxu0 0.0
        %779 = vmatmul.mubr.f32.gmra.mxu0 %v712
        %v780 = vpop.f32.mrf.mxu0
        %v781 = vadd.f32 %v709, %v780
        %v782 = vpop.f32.mrf.mxu0
        %v783 = vadd.f32 %v709, %v782
        %784 = vdwg.mxu0
        %v785 = vtanh.pop %v781
        %v786 = vtanh.pop %v783
        %787 = vxpose.xlu0.b32.start [1/16] %v785, 128
        %788 = vxpose.xlu0.b32.cont [2/16] 0.0, 128
        %789 = vxpose.xlu0.b32.cont [3/16] 0.0, 128
        %790 = vxpose.xlu0.b32.cont [4/16] 0.0, 128
        %791 = vxpose.xlu0.b32.cont [5/16] 0.0, 128
        %792 = vxpose.xlu0.b32.cont [6/16] 0.0, 128
        %793 = vxpose.xlu0.b32.cont [7/16] 0.0, 128
        %794 = vxpose.xlu0.b32.cont [8/16] 0.0, 128
        %795 = vxpose.xlu0.b32.cont [9/16] 0.0, 128
        %796 = vxpose.xlu0.b32.cont [10/16] 0.0, 128
        %797 = vxpose.xlu0.b32.cont [11/16] 0.0, 128
        %798 = vxpose.xlu0.b32.cont [12/16] 0.0, 128
        %799 = vxpose.xlu0.b32.cont [13/16] 0.0, 128
        %800 = vxpose.xlu0.b32.cont [14/16] 0.0, 128
        %801 = vxpose.xlu0.b32.cont [15/16] 0.0, 128
        %802 = vxpose.xlu0.b32.end [16/16] 0.0, 128
        %v803 = vpop.trf.xlu0
        %v804 = vpop.trf.xlu0
        %v805 = vpop.trf.xlu0
        %v806 = vpop.trf.xlu0
        %v807 = vpop.trf.xlu0
        %v808 = vpop.trf.xlu0
        %v809 = vpop.trf.xlu0
        %v810 = vpop.trf.xlu0
        %v811 = vpop.trf.xlu0
        %v812 = vpop.trf.xlu0
        %v813 = vpop.trf.xlu0
        %v814 = vpop.trf.xlu0
        %v815 = vpop.trf.xlu0
        %v816 = vpop.trf.xlu0
        %v817 = vpop.trf.xlu0
        %v818 = vpop.trf.xlu0
        %819 = vxpose.xlu0.b32.start [1/16] %v786, 128
        %820 = vxpose.xlu0.b32.cont [2/16] 0.0, 128
        %821 = vxpose.xlu0.b32.cont [3/16] 0.0, 128
        %822 = vxpose.xlu0.b32.cont [4/16] 0.0, 128
        %823 = vxpose.xlu0.b32.cont [5/16] 0.0, 128
        %824 = vxpose.xlu0.b32.cont [6/16] 0.0, 128
        %825 = vxpose.xlu0.b32.cont [7/16] 0.0, 128
        %826 = vxpose.xlu0.b32.cont [8/16] 0.0, 128
        %827 = vxpose.xlu0.b32.cont [9/16] 0.0, 128
        %828 = vxpose.xlu0.b32.cont [10/16] 0.0, 128
        %829 = vxpose.xlu0.b32.cont [11/16] 0.0, 128
        %830 = vxpose.xlu0.b32.cont [12/16] 0.0, 128
        %831 = vxpose.xlu0.b32.cont [13/16] 0.0, 128
        %832 = vxpose.xlu0.b32.cont [14/16] 0.0, 128
        %833 = vxpose.xlu0.b32.cont [15/16] 0.0, 128
        %834 = vxpose.xlu0.b32.end [16/16] 0.0, 128
        %v835 = vpop.trf.xlu0
        %v836 = vpop.trf.xlu0
        %v837 = vpop.trf.xlu0
        %v838 = vpop.trf.xlu0
        %v839 = vpop.trf.xlu0
        %v840 = vpop.trf.xlu0
        %v841 = vpop.trf.xlu0
        %v842 = vpop.trf.xlu0
        %v843 = vpop.trf.xlu0
        %v844 = vpop.trf.xlu0
        %v845 = vpop.trf.xlu0
        %v846 = vpop.trf.xlu0
        %v847 = vpop.trf.xlu0
        %v848 = vpop.trf.xlu0
        %v849 = vpop.trf.xlu0
        %v850 = vpop.trf.xlu0
        %vm851 = vcmask 64512
        %852 = vst.msk [vmem:[%s280] sm:$0xff] %vm851, %v803
        %853 = vst.msk [vmem:[%s280 + $0x8] sm:$0xff] %vm851, %v804
        %854 = vst.msk [vmem:[%s280 + $0x10] sm:$0xff] %vm851, %v805
        %855 = vst.msk [vmem:[%s280 + $0x18] sm:$0xff] %vm851, %v806
        %856 = vst.msk [vmem:[%s280 + $0x20] sm:$0xff] %vm851, %v807
        %857 = vst.msk [vmem:[%s280 + $0x28] sm:$0xff] %vm851, %v808
        %858 = vst.msk [vmem:[%s280 + $0x30] sm:$0xff] %vm851, %v809
        %859 = vst.msk [vmem:[%s280 + $0x38] sm:$0xff] %vm851, %v810
        %860 = vst.msk [vmem:[%s280 + $0x40] sm:$0xff] %vm851, %v811
        %861 = vst.msk [vmem:[%s280 + $0x48] sm:$0xff] %vm851, %v812
        %862 = vst.msk [vmem:[%s280 + $0x50] sm:$0xff] %vm851, %v813
        %863 = vst.msk [vmem:[%s280 + $0x58] sm:$0xff] %vm851, %v814
        %864 = vst.msk [vmem:[%s280 + $0x60] sm:$0xff] %vm851, %v815
        %865 = vst.msk [vmem:[%s280 + $0x68] sm:$0xff] %vm851, %v816
        %866 = vst.msk [vmem:[%s280 + $0x70] sm:$0xff] %vm851, %v817
        %867 = vst.msk [vmem:[%s280 + $0x78] sm:$0xff] %vm851, %v818
        %868 = vst.msk [vmem:[%s280 + $0x80] sm:$0xff] %vm851, %v835
        %869 = vst.msk [vmem:[%s280 + $0x88] sm:$0xff] %vm851, %v836
        %870 = vst.msk [vmem:[%s280 + $0x90] sm:$0xff] %vm851, %v837
        %871 = vst.msk [vmem:[%s280 + $0x98] sm:$0xff] %vm851, %v838
        %872 = vst.msk [vmem:[%s280 + $0xa0] sm:$0xff] %vm851, %v839
        %873 = vst.msk [vmem:[%s280 + $0xa8] sm:$0xff] %vm851, %v840
        %874 = vst.msk [vmem:[%s280 + $0xb0] sm:$0xff] %vm851, %v841
        %875 = vst.msk [vmem:[%s280 + $0xb8] sm:$0xff] %vm851, %v842
        %876 = vst.msk [vmem:[%s280 + $0xc0] sm:$0xff] %vm851, %v843
        %877 = vst.msk [vmem:[%s280 + $0xc8] sm:$0xff] %vm851, %v844
        %878 = vst.msk [vmem:[%s280 + $0xd0] sm:$0xff] %vm851, %v845
        %879 = vst.msk [vmem:[%s280 + $0xd8] sm:$0xff] %vm851, %v846
        %880 = vst.msk [vmem:[%s280 + $0xe0] sm:$0xff] %vm851, %v847
        %881 = vst.msk [vmem:[%s280 + $0xe8] sm:$0xff] %vm851, %v848
        %882 = vst.msk [vmem:[%s280 + $0xf0] sm:$0xff] %vm851, %v849
        %883 = vst.msk [vmem:[%s280 + $0xf8] sm:$0xff] %vm851, %v850
        %s884 = sand.u32 %s178, 1
        %s885 = sand.u32 %s178, 1
        %s886 = smul.addr %s885, 256
        %s887 = scalar_lea.vmem [#allocation2], %s886
        // Predicated region
        $region49: #{tpu_custom_call.1} parent=47 // pred_check
          %p888 = pneg %p188
        $region50: #{tpu_custom_call.1} parent=47 // pred_check_branch
          %890 = sbr.rel (%p888) target = $region52
        $region51: #{tpu_custom_call.1} parent=47 // pred_region
          %s891 = smul.u32 32, %s18
          %s892 = ssub.s32 38, %s891
          %p893 = scmp.lt.s32.totalorder %s892, 32
          %s894 = scalar_select %p893, %s892, 32
          %s895 = smul.u32 128, %s894
          %p896 = scmp.ne.s32.totalorder 0, %s895
          %s897 = smul.addr %s891, 8
          %s898 = scalar_lea.vmem %s7, %s897
          // Predicated region
          $region53: #{tpu_custom_call.1} parent=51 // pred_check
            %p899 = pneg %p896
          $region54: #{tpu_custom_call.1} parent=51 // pred_check_branch
            %901 = sbr.rel (%p899) target = $region56
          $region55: #{tpu_custom_call.1} parent=51 // pred_region
            // Predicated region
            $region57: #{tpu_custom_call.1} parent=55 // pred_check
              _
            $region58: #{tpu_custom_call.1} parent=55 // pred_check_branch
              %903 = sbr.rel (0) target = $region60
            $region59: #{tpu_custom_call.1} parent=55 // pred_region
              // Predicated region
              $region79: #{tpu_custom_call.1} parent=59 // pred_check
                _
              $region80: #{tpu_custom_call.1} parent=59 // pred_check_branch
                %1015 = sbr.rel (0) target = $region82
              $region81: #{tpu_custom_call.1} parent=59 // pred_region
                %s1016 = sshrl.u32 %s894, 5
                // While loop
                $region83: #{tpu_custom_call.1} parent=81 // loop_pre_header
                  _
                $region84: #{tpu_custom_call.1} parent=81 // loop_header
                  %s1018 = sphi 0, %s1020
                  %p1019 = scmp.ge.s32.totalorder %s1018, %s1016
                  %s1023 = sphi 0, %s1092
                  %s1024 = sphi %s887, %s1095
                  %s1025 = sphi %s898, %s1096
                $region85: #{tpu_custom_call.1} parent=81 // loop_header_branch
                  %1022 = sbr.rel (%p1019) target = $region89
                $region86: #{tpu_custom_call.1} parent=81 // loop_body
                  %v1026 = vld [vmem:[%s1024] sm:$0xff]
                  %1027 = vst [vmem:[%s1025] sm:$0xff] %v1026
                  %v1028 = vld [vmem:[%s1024 + $0x8] sm:$0xff]
                  %1029 = vst [vmem:[%s1025 + $0x8] sm:$0xff] %v1028
                  %v1030 = vld [vmem:[%s1024 + $0x10] sm:$0xff]
                  %1031 = vst [vmem:[%s1025 + $0x10] sm:$0xff] %v1030
                  %v1032 = vld [vmem:[%s1024 + $0x18] sm:$0xff]
                  %1033 = vst [vmem:[%s1025 + $0x18] sm:$0xff] %v1032
                  %v1034 = vld [vmem:[%s1024 + $0x20] sm:$0xff]
                  %1035 = vst [vmem:[%s1025 + $0x20] sm:$0xff] %v1034
                  %v1036 = vld [vmem:[%s1024 + $0x28] sm:$0xff]
                  %1037 = vst [vmem:[%s1025 + $0x28] sm:$0xff] %v1036
                  %v1038 = vld [vmem:[%s1024 + $0x30] sm:$0xff]
                  %1039 = vst [vmem:[%s1025 + $0x30] sm:$0xff] %v1038
                  %v1040 = vld [vmem:[%s1024 + $0x38] sm:$0xff]
                  %1041 = vst [vmem:[%s1025 + $0x38] sm:$0xff] %v1040
                  %v1042 = vld [vmem:[%s1024 + $0x40] sm:$0xff]
                  %1043 = vst [vmem:[%s1025 + $0x40] sm:$0xff] %v1042
                  %v1044 = vld [vmem:[%s1024 + $0x48] sm:$0xff]
                  %1045 = vst [vmem:[%s1025 + $0x48] sm:$0xff] %v1044
                  %v1046 = vld [vmem:[%s1024 + $0x50] sm:$0xff]
                  %1047 = vst [vmem:[%s1025 + $0x50] sm:$0xff] %v1046
                  %v1048 = vld [vmem:[%s1024 + $0x58] sm:$0xff]
                  %1049 = vst [vmem:[%s1025 + $0x58] sm:$0xff] %v1048
                  %v1050 = vld [vmem:[%s1024 + $0x60] sm:$0xff]
                  %1051 = vst [vmem:[%s1025 + $0x60] sm:$0xff] %v1050
                  %v1052 = vld [vmem:[%s1024 + $0x68] sm:$0xff]
                  %1053 = vst [vmem:[%s1025 + $0x68] sm:$0xff] %v1052
                  %v1054 = vld [vmem:[%s1024 + $0x70] sm:$0xff]
                  %1055 = vst [vmem:[%s1025 + $0x70] sm:$0xff] %v1054
                  %v1056 = vld [vmem:[%s1024 + $0x78] sm:$0xff]
                  %1057 = vst [vmem:[%s1025 + $0x78] sm:$0xff] %v1056
                  %v1058 = vld [vmem:[%s1024 + $0x80] sm:$0xff]
                  %1059 = vst [vmem:[%s1025 + $0x80] sm:$0xff] %v1058
                  %v1060 = vld [vmem:[%s1024 + $0x88] sm:$0xff]
                  %1061 = vst [vmem:[%s1025 + $0x88] sm:$0xff] %v1060
                  %v1062 = vld [vmem:[%s1024 + $0x90] sm:$0xff]
                  %1063 = vst [vmem:[%s1025 + $0x90] sm:$0xff] %v1062
                  %v1064 = vld [vmem:[%s1024 + $0x98] sm:$0xff]
                  %1065 = vst [vmem:[%s1025 + $0x98] sm:$0xff] %v1064
                  %v1066 = vld [vmem:[%s1024 + $0xa0] sm:$0xff]
                  %1067 = vst [vmem:[%s1025 + $0xa0] sm:$0xff] %v1066
                  %v1068 = vld [vmem:[%s1024 + $0xa8] sm:$0xff]
                  %1069 = vst [vmem:[%s1025 + $0xa8] sm:$0xff] %v1068
                  %v1070 = vld [vmem:[%s1024 + $0xb0] sm:$0xff]
                  %1071 = vst [vmem:[%s1025 + $0xb0] sm:$0xff] %v1070
                  %v1072 = vld [vmem:[%s1024 + $0xb8] sm:$0xff]
                  %1073 = vst [vmem:[%s1025 + $0xb8] sm:$0xff] %v1072
                  %v1074 = vld [vmem:[%s1024 + $0xc0] sm:$0xff]
                  %1075 = vst [vmem:[%s1025 + $0xc0] sm:$0xff] %v1074
                  %v1076 = vld [vmem:[%s1024 + $0xc8] sm:$0xff]
                  %1077 = vst [vmem:[%s1025 + $0xc8] sm:$0xff] %v1076
                  %v1078 = vld [vmem:[%s1024 + $0xd0] sm:$0xff]
                  %1079 = vst [vmem:[%s1025 + $0xd0] sm:$0xff] %v1078
                  %v1080 = vld [vmem:[%s1024 + $0xd8] sm:$0xff]
                  %1081 = vst [vmem:[%s1025 + $0xd8] sm:$0xff] %v1080
                  %v1082 = vld [vmem:[%s1024 + $0xe0] sm:$0xff]
                  %1083 = vst [vmem:[%s1025 + $0xe0] sm:$0xff] %v1082
                  %v1084 = vld [vmem:[%s1024 + $0xe8] sm:$0xff]
                  %1085 = vst [vmem:[%s1025 + $0xe8] sm:$0xff] %v1084
                  %v1086 = vld [vmem:[%s1024 + $0xf0] sm:$0xff]
                  %1087 = vst [vmem:[%s1025 + $0xf0] sm:$0xff] %v1086
                  %v1088 = vld [vmem:[%s1024 + $0xf8] sm:$0xff]
                  %1089 = vst [vmem:[%s1025 + $0xf8] sm:$0xff] %v1088
                  %s1090 = sadd.s32 1, %s1023
                  %p1091 = scmp.ge.s32.totalorder %s1090, %s1016
                  %s1092 = scalar_select %p1091, 0, %s1090
                  %s1093 = smul.u32 %s1092, 256
                  %s1094 = smul.u32 %s1092, 256
                  %s1095 = scalar_lea.vmem %s887, %s1093 [#allocation2]
                  %s1096 = scalar_lea.vmem %s898, %s1094
                $region87: #{tpu_custom_call.1} parent=81 // loop_footer
                  %s1020 = sadd.s32 %s1018, 1
                $region88: #{tpu_custom_call.1} parent=81 // loop_footer_branch
                  %1017 = sbr.rel target = $region84
                $region89: #{tpu_custom_call.1} parent=81 // loop_exit
                  _
                %s1097 = sshrl.u32 %s894, 5
                %s1098 = sand.u32 %s894, 31
                %s1099 = smul.u32 %s1097, 32
                %s1100 = smul.u32 8, %s1099
                %s1101 = scalar_lea.vmem %s887, %s1100 [#allocation2]
                %s1102 = smul.u32 8, %s1099
                %s1103 = scalar_lea.vmem %s898, %s1102
                // While loop
                $region90: #{tpu_custom_call.1} parent=81 // loop_pre_header
                  _
                $region91: #{tpu_custom_call.1} parent=81 // loop_header
                  %s1105 = sphi 0, %s1107
                  %p1106 = scmp.ge.s32.totalorder %s1105, %s1098
                  %s1110 = sphi 0, %s1117
                  %s1111 = sphi %s1101, %s1120
                  %s1112 = sphi %s1103, %s1121
                $region92: #{tpu_custom_call.1} parent=81 // loop_header_branch
                  %1109 = sbr.rel (%p1106) target = $region96
                $region93: #{tpu_custom_call.1} parent=81 // loop_body
                  %v1113 = vld [vmem:[%s1111] sm:$0xff]
                  %1114 = vst [vmem:[%s1112] sm:$0xff] %v1113
                  %s1115 = sadd.s32 1, %s1110
                  %p1116 = scmp.ge.s32.totalorder %s1115, %s1098
                  %s1117 = scalar_select %p1116, 0, %s1115
                  %s1118 = smul.u32 %s1117, 8
                  %s1119 = smul.u32 %s1117, 8
                  %s1120 = scalar_lea.vmem %s1101, %s1118 [#allocation2]
                  %s1121 = scalar_lea.vmem %s1103, %s1119
                $region94: #{tpu_custom_call.1} parent=81 // loop_footer
                  %s1107 = sadd.s32 %s1105, 1
                $region95: #{tpu_custom_call.1} parent=81 // loop_footer_branch
                  %1104 = sbr.rel target = $region91
                $region96: #{tpu_custom_call.1} parent=81 // loop_exit
                  _
              $region82: #{tpu_custom_call.1} parent=59 // pred_fallthru
                _
              // Predicated region
              $region97: #{tpu_custom_call.1} parent=59 // pred_check
                _
              $region98: #{tpu_custom_call.1} parent=59 // pred_check_branch
                %1123 = sbr.rel target = $region100
              $region99: #{tpu_custom_call.1} parent=59 // pred_region
                _
              $region100: #{tpu_custom_call.1} parent=59 // pred_fallthru
                _
            $region60: #{tpu_custom_call.1} parent=55 // pred_fallthru
              _
            // Predicated region
            $region61: #{tpu_custom_call.1} parent=55 // pred_check
              _
            $region62: #{tpu_custom_call.1} parent=55 // pred_check_branch
              %905 = sbr.rel target = $region64
            $region63: #{tpu_custom_call.1} parent=55 // pred_region
              %s907 = ssub.s32 256, 1
              %s908 = sshrl.u32 %s894, 5
              // While loop
              $region65: #{tpu_custom_call.1} parent=63 // loop_pre_header
                _
              $region66: #{tpu_custom_call.1} parent=63 // loop_header
                %s910 = sphi 0, %s912
                %p911 = scmp.ge.s32.totalorder %s910, %s908
                %s915 = sphi 0, %s984
                %s916 = sphi %s887, %s987
                %s917 = sphi %s898, %s988
              $region67: #{tpu_custom_call.1} parent=63 // loop_header_branch
                %914 = sbr.rel (%p911) target = $region71
              $region68: #{tpu_custom_call.1} parent=63 // loop_body
                %v918 = vld [vmem:[%s916] sm:%s907]
                %919 = vst [vmem:[%s917] sm:%s907] %v918
                %v920 = vld [vmem:[%s916 + $0x8] sm:%s907]
                %921 = vst [vmem:[%s917 + $0x8] sm:%s907] %v920
                %v922 = vld [vmem:[%s916 + $0x10] sm:%s907]
                %923 = vst [vmem:[%s917 + $0x10] sm:%s907] %v922
                %v924 = vld [vmem:[%s916 + $0x18] sm:%s907]
                %925 = vst [vmem:[%s917 + $0x18] sm:%s907] %v924
                %v926 = vld [vmem:[%s916 + $0x20] sm:%s907]
                %927 = vst [vmem:[%s917 + $0x20] sm:%s907] %v926
                %v928 = vld [vmem:[%s916 + $0x28] sm:%s907]
                %929 = vst [vmem:[%s917 + $0x28] sm:%s907] %v928
                %v930 = vld [vmem:[%s916 + $0x30] sm:%s907]
                %931 = vst [vmem:[%s917 + $0x30] sm:%s907] %v930
                %v932 = vld [vmem:[%s916 + $0x38] sm:%s907]
                %933 = vst [vmem:[%s917 + $0x38] sm:%s907] %v932
                %v934 = vld [vmem:[%s916 + $0x40] sm:%s907]
                %935 = vst [vmem:[%s917 + $0x40] sm:%s907] %v934
                %v936 = vld [vmem:[%s916 + $0x48] sm:%s907]
                %937 = vst [vmem:[%s917 + $0x48] sm:%s907] %v936
                %v938 = vld [vmem:[%s916 + $0x50] sm:%s907]
                %939 = vst [vmem:[%s917 + $0x50] sm:%s907] %v938
                %v940 = vld [vmem:[%s916 + $0x58] sm:%s907]
                %941 = vst [vmem:[%s917 + $0x58] sm:%s907] %v940
                %v942 = vld [vmem:[%s916 + $0x60] sm:%s907]
                %943 = vst [vmem:[%s917 + $0x60] sm:%s907] %v942
                %v944 = vld [vmem:[%s916 + $0x68] sm:%s907]
                %945 = vst [vmem:[%s917 + $0x68] sm:%s907] %v944
                %v946 = vld [vmem:[%s916 + $0x70] sm:%s907]
                %947 = vst [vmem:[%s917 + $0x70] sm:%s907] %v946
                %v948 = vld [vmem:[%s916 + $0x78] sm:%s907]
                %949 = vst [vmem:[%s917 + $0x78] sm:%s907] %v948
                %v950 = vld [vmem:[%s916 + $0x80] sm:%s907]
                %951 = vst [vmem:[%s917 + $0x80] sm:%s907] %v950
                %v952 = vld [vmem:[%s916 + $0x88] sm:%s907]
                %953 = vst [vmem:[%s917 + $0x88] sm:%s907] %v952
                %v954 = vld [vmem:[%s916 + $0x90] sm:%s907]
                %955 = vst [vmem:[%s917 + $0x90] sm:%s907] %v954
                %v956 = vld [vmem:[%s916 + $0x98] sm:%s907]
                %957 = vst [vmem:[%s917 + $0x98] sm:%s907] %v956
                %v958 = vld [vmem:[%s916 + $0xa0] sm:%s907]
                %959 = vst [vmem:[%s917 + $0xa0] sm:%s907] %v958
                %v960 = vld [vmem:[%s916 + $0xa8] sm:%s907]
                %961 = vst [vmem:[%s917 + $0xa8] sm:%s907] %v960
                %v962 = vld [vmem:[%s916 + $0xb0] sm:%s907]
                %963 = vst [vmem:[%s917 + $0xb0] sm:%s907] %v962
                %v964 = vld [vmem:[%s916 + $0xb8] sm:%s907]
                %965 = vst [vmem:[%s917 + $0xb8] sm:%s907] %v964
                %v966 = vld [vmem:[%s916 + $0xc0] sm:%s907]
                %967 = vst [vmem:[%s917 + $0xc0] sm:%s907] %v966
                %v968 = vld [vmem:[%s916 + $0xc8] sm:%s907]
                %969 = vst [vmem:[%s917 + $0xc8] sm:%s907] %v968
                %v970 = vld [vmem:[%s916 + $0xd0] sm:%s907]
                %971 = vst [vmem:[%s917 + $0xd0] sm:%s907] %v970
                %v972 = vld [vmem:[%s916 + $0xd8] sm:%s907]
                %973 = vst [vmem:[%s917 + $0xd8] sm:%s907] %v972
                %v974 = vld [vmem:[%s916 + $0xe0] sm:%s907]
                %975 = vst [vmem:[%s917 + $0xe0] sm:%s907] %v974
                %v976 = vld [vmem:[%s916 + $0xe8] sm:%s907]
                %977 = vst [vmem:[%s917 + $0xe8] sm:%s907] %v976
                %v978 = vld [vmem:[%s916 + $0xf0] sm:%s907]
                %979 = vst [vmem:[%s917 + $0xf0] sm:%s907] %v978
                %v980 = vld [vmem:[%s916 + $0xf8] sm:%s907]
                %981 = vst [vmem:[%s917 + $0xf8] sm:%s907] %v980
                %s982 = sadd.s32 1, %s915
                %p983 = scmp.ge.s32.totalorder %s982, %s908
                %s984 = scalar_select %p983, 0, %s982
                %s985 = smul.u32 %s984, 256
                %s986 = smul.u32 %s984, 256
                %s987 = scalar_lea.vmem %s887, %s985 [#allocation2]
                %s988 = scalar_lea.vmem %s898, %s986
              $region69: #{tpu_custom_call.1} parent=63 // loop_footer
                %s912 = sadd.s32 %s910, 1
              $region70: #{tpu_custom_call.1} parent=63 // loop_footer_branch
                %909 = sbr.rel target = $region66
              $region71: #{tpu_custom_call.1} parent=63 // loop_exit
                _
              %s989 = sshrl.u32 %s894, 5
              %s990 = sand.u32 %s894, 31
              %s991 = smul.u32 %s989, 32
              %s992 = smul.u32 8, %s991
              %s993 = scalar_lea.vmem %s887, %s992 [#allocation2]
              %s994 = smul.u32 8, %s991
              %s995 = scalar_lea.vmem %s898, %s994
              // While loop
              $region72: #{tpu_custom_call.1} parent=63 // loop_pre_header
                _
              $region73: #{tpu_custom_call.1} parent=63 // loop_header
                %s997 = sphi 0, %s999
                %p998 = scmp.ge.s32.totalorder %s997, %s990
                %s1002 = sphi 0, %s1009
                %s1003 = sphi %s993, %s1012
                %s1004 = sphi %s995, %s1013
              $region74: #{tpu_custom_call.1} parent=63 // loop_header_branch
                %1001 = sbr.rel (%p998) target = $region78
              $region75: #{tpu_custom_call.1} parent=63 // loop_body
                %v1005 = vld [vmem:[%s1003] sm:%s907]
                %1006 = vst [vmem:[%s1004] sm:%s907] %v1005
                %s1007 = sadd.s32 1, %s1002
                %p1008 = scmp.ge.s32.totalorder %s1007, %s990
                %s1009 = scalar_select %p1008, 0, %s1007
                %s1010 = smul.u32 %s1009, 8
                %s1011 = smul.u32 %s1009, 8
                %s1012 = scalar_lea.vmem %s993, %s1010 [#allocation2]
                %s1013 = scalar_lea.vmem %s995, %s1011
              $region76: #{tpu_custom_call.1} parent=63 // loop_footer
                %s999 = sadd.s32 %s997, 1
              $region77: #{tpu_custom_call.1} parent=63 // loop_footer_branch
                %996 = sbr.rel target = $region73
              $region78: #{tpu_custom_call.1} parent=63 // loop_exit
                _
            $region64: #{tpu_custom_call.1} parent=55 // pred_fallthru
              _
          $region56: #{tpu_custom_call.1} parent=51 // pred_fallthru
            _
          %1124 = vnop
        $region52: #{tpu_custom_call.1} parent=47 // pred_fallthru
          _
      $region48: #{tpu_custom_call.1} parent=5 // pred_fallthru
        _
      %p1125 = scmp.le.s32.totalorder 2, %s13
      // Predicated region
      $region101: #{tpu_custom_call.1} parent=5 // pred_check
        %p1126 = pneg %p1125
      $region102: #{tpu_custom_call.1} parent=5 // pred_check_branch
        %1128 = sbr.rel (%p1126) target = $region104
      $region103: #{tpu_custom_call.1} parent=5 // pred_region
        %s1129 = ssub.s32 %s13, 2
        // Predicated region
        $region105: #{tpu_custom_call.1} parent=103 // pred_check
          %p1130 = pneg %p194
        $region106: #{tpu_custom_call.1} parent=103 // pred_check_branch
          %1132 = sbr.rel (%p1130) target = $region108
        $region107: #{tpu_custom_call.1} parent=103 // pred_region
          %s1133 = sand.u32 %s179, 1
          %s1134 = sand.u32 %s179, 1
          %s1135 = smul.addr %s1134, 256
          %s1136 = scalar_lea.vmem [#allocation2], %s1135
        $region108: #{tpu_custom_call.1} parent=103 // pred_fallthru
          _
      $region104: #{tpu_custom_call.1} parent=5 // pred_fallthru
        _
    $region6: #{tpu_custom_call.1} parent=1 // loop_footer
      %s17 = sadd.s32 1, %s13
    $region7: #{tpu_custom_call.1} parent=1 // loop_footer_branch
      %12 = sbr.rel target = $region3
    $region8: #{tpu_custom_call.1} parent=1 // loop_exit
      _

</llo_original>
